<compile_context>
chip_gen: v6e
topology: v6e:2x2x1
jax: 0.10.0
libtpu: 0.0.40
codegen_flags: <defaults>
</compile_context>

<pallas_src>
import jax
import jax.numpy as jnp
import numpy as np
from jax.experimental import pallas as pl
from jax.experimental.pallas import tpu as pltpu


def _pos_enc_kernel(params_ref, x_ref, o_ref):
    # params_ref: (group+1, 128)  rows [0, group): freq-scaled lane masks
    #                             row  group     : pi/2 phase on cos lanes
    # x_ref:      (1, TR, group)  `group` consecutive sample values per row
    # o_ref:      (1, TR, 128)    128 consecutive elems of the flat encoding
    group = x_ref.shape[2]
    x = x_ref[0]                                  # (TR, group), f32
    angle = params_ref[group:group + 1, :]        # (1, 128) phase row
    for j in range(group):                        # static unroll, group = 128 // 2E
        angle = angle + x[:, j:j + 1] * params_ref[j:j + 1, :]
    o_ref[0] = jnp.sin(angle).astype(o_ref.dtype)


def position_encoder(sample_points, freq_bands, *, tile_rows=2048):
    """sample_points: (B, N, D), freq_bands: (E,) -> (B, D*2*E, N) (PyTorch layout)."""
    B, N, D = sample_points.shape
    E = int(freq_bands.shape[0])
    two_e = 2 * E
    # TODO(synk): support encoding_dim where 2*E does not divide 128 (needs a
    # different lane grouping or the transpose-based fallback kernel).
    assert 128 % two_e == 0, f"2*encoding_dim={two_e} must divide 128"
    group = 128 // two_e                          # points per 128-lane output row
    M = N * D                                     # flattened point count
    F = M * two_e                                 # flat output length per batch
    R = pl.cdiv(M, group)                         # 128-lane output rows (= cdiv(F,128))

    if R <= tile_rows:
        TR, n_tiles = R, 1
    else:
        TR = max(8, (tile_rows // 8) * 8)
        n_tiles = pl.cdiv(R, TR)

    cdt = jnp.float32                             # compute in f32 (v5e has no bf16 VPU/EUP)

    # ---- input plumbing (touches only the 2E-times-smaller input) ----
    x_flat = sample_points.reshape(B, M).astype(cdt)
    m_pad = n_tiles * TR * group
    if m_pad != M:
        x_flat = jnp.pad(x_flat, ((0, 0), (0, m_pad - M)))
    x_rows = x_flat.reshape(B, n_tiles * TR, group)

    # ---- constant per-lane tables: freq-scaled selection masks + phase ----
    lane = jnp.arange(128)
    freq_pat = freq_bands.astype(cdt)[lane % E]                       # (128,)
    sel = (lane[None, :] // two_e) == jnp.arange(group)[:, None]      # (group, 128)
    half_pi = jnp.asarray(np.pi / 2.0, dtype=cdt)
    phase = jnp.where((lane % two_e) >= E, half_pi, cdt(0.0))         # (128,)
    params = jnp.concatenate(
        [sel.astype(cdt) * freq_pat[None, :], phase[None, :]], axis=0)  # (group+1, 128)

    out_rows = pl.pallas_call(
        _pos_enc_kernel,
        out_shape=jax.ShapeDtypeStruct((B, R, 128), sample_points.dtype),
        grid=(B, n_tiles),
        in_specs=[
            pl.BlockSpec((group + 1, 128), lambda b, t: (0, 0)),   # constants, DMA'd once
            pl.BlockSpec((1, TR, group), lambda b, t: (b, t, 0)),  # point rows
        ],
        out_specs=pl.BlockSpec((1, TR, 128), lambda b, t: (b, t, 0)),
        compiler_params=pltpu.CompilerParams(
            dimension_semantics=("parallel", "parallel")),
    )(params, x_rows)

    # ---- layout plumbing back to the exact PyTorch semantics ----
    flat = out_rows.reshape(B, R * 128)
    if R * 128 != F:                              # ragged tail (M % group != 0) only
        flat = flat[:, :F]
    # flat per batch IS the contiguous (N, D, 2E) buffer, so torch's
    # `.view(B, -1, N)` is a plain row-major reshape here (free).
    return flat.reshape(B, D * two_e, N)


def _reference(sample_points, freq_bands):
    # Pure-JAX reference reproducing the PyTorch forward exactly.
    B, N, D = sample_points.shape
    E = freq_bands.shape[0]
    angle = sample_points[..., None] * freq_bands[None, None, None, :]
    enc = jnp.concatenate([jnp.sin(angle), jnp.cos(angle)], axis=-1)
    return enc.reshape(B, D * 2 * E, N)


if __name__ == "__main__":
    key = jax.random.PRNGKey(0)
    ks = jax.random.split(key, 4)

    # Deterministic parameter init, same formula as the module's __init__.
    E = 16
    freq_bands = jnp.asarray(
        [1.0 / 10000.0 ** (2 * (i // 2) / E) for i in range(E)], dtype=jnp.float32)

    cases = [
        # (B, N, D, tile_rows)
        (2, 8, 3, 2048),     # tiny, single row tile, aligned tail
        (2, 7, 3, 2048),     # N*D % group != 0 -> ragged-tail slice path
        (2, 200, 3, 16),     # multi tile + partial last output block + padded x rows
        (1, 4096, 3, 2048),  # realistic size, default tiling (2 row tiles, partial last)
    ]
    for (B, N, D, trows), k in zip(cases, ks):
        pts = jax.random.normal(k, (B, N, D), dtype=jnp.float32)
        out = jax.block_until_ready(position_encoder(pts, freq_bands, tile_rows=trows))
        ref = _reference(pts, freq_bands)
        assert out.shape == (B, D * 2 * E, N), out.shape
        # cos is evaluated as sin(x + pi/2); tolerance covers the ~4e-7 f32
        # deviation of that identity plus normal transcendental ulp noise.
        np.testing.assert_allclose(np.asarray(out), np.asarray(ref),
                                   rtol=1e-6, atol=2e-6)

    print("KERNEL_OK")
</pallas_src>

<mosaic_0001>
module attributes {stable_mosaic.version = 11 : i64} {
  func.func @_pos_enc_kernel(%arg0: i32, %arg1: i32, %arg2: memref<5x128xf32, #tpu.memory_space<vmem>>, %arg3: memref<1x6x4xf32, #tpu.memory_space<vmem>>, %arg4: memref<1x6x128xf32, #tpu.memory_space<vmem>>) attributes {dimension_semantics = [#tpu.dimension_semantics<parallel>, #tpu.dimension_semantics<parallel>], iteration_bounds = array<i64: 2, 1>, scalar_prefetch = 0 : i64, scratch_operands = 0 : i64, tpu.core_type = #tpu.core_type<tc>, window_params = [{pipeline_mode = #tpu.pipeline_mode<synchronous>, transform_indices = @transform_0, window_bounds = array<i64: 5, 128>}, {transform_indices = @transform_1, window_bounds = array<i64: 1, 6, 4>}, {transform_indices = @transform_2, window_bounds = array<i64: 1, 6, 128>}]} {
    %c0 = arith.constant 0 : index
    %c0_0 = arith.constant 0 : index
    %c0_1 = arith.constant 0 : index
    %0 = vector.load %arg3[%c0, %c0_0, %c0_1] : memref<1x6x4xf32, #tpu.memory_space<vmem>>, vector<1x6x4xf32>
    %1 = vector.shape_cast %0 : vector<1x6x4xf32> to vector<6x4xf32>
    %c4 = arith.constant 4 : index
    %c0_2 = arith.constant 0 : index
    %2 = vector.load %arg2[%c4, %c0_2] : memref<5x128xf32, #tpu.memory_space<vmem>>, vector<1x128xf32>
    %3 = vector.extract_strided_slice %1 {offsets = [0, 0], sizes = [6, 1], strides = [1, 1]} : vector<6x4xf32> to vector<6x1xf32>
    %c0_3 = arith.constant 0 : index
    %c0_4 = arith.constant 0 : index
    %4 = vector.load %arg2[%c0_3, %c0_4] : memref<5x128xf32, #tpu.memory_space<vmem>>, vector<1x128xf32>
    %5 = vector.broadcast %3 : vector<6x1xf32> to vector<6x128xf32>
    %6 = vector.broadcast %4 : vector<1x128xf32> to vector<6x128xf32>
    %7 = arith.mulf %5, %6 : vector<6x128xf32>
    %8 = vector.broadcast %2 : vector<1x128xf32> to vector<6x128xf32>
    %9 = arith.addf %8, %7 : vector<6x128xf32>
    %10 = vector.extract_strided_slice %1 {offsets = [0, 1], sizes = [6, 1], strides = [1, 1]} : vector<6x4xf32> to vector<6x1xf32>
    %c1 = arith.constant 1 : index
    %c0_5 = arith.constant 0 : index
    %11 = vector.load %arg2[%c1, %c0_5] : memref<5x128xf32, #tpu.memory_space<vmem>>, vector<1x128xf32>
    %12 = vector.broadcast %10 : vector<6x1xf32> to vector<6x128xf32>
    %13 = vector.broadcast %11 : vector<1x128xf32> to vector<6x128xf32>
    %14 = arith.mulf %12, %13 : vector<6x128xf32>
    %15 = arith.addf %9, %14 : vector<6x128xf32>
    %16 = vector.extract_strided_slice %1 {offsets = [0, 2], sizes = [6, 1], strides = [1, 1]} : vector<6x4xf32> to vector<6x1xf32>
    %c2 = arith.constant 2 : index
    %c0_6 = arith.constant 0 : index
    %17 = vector.load %arg2[%c2, %c0_6] : memref<5x128xf32, #tpu.memory_space<vmem>>, vector<1x128xf32>
    %18 = vector.broadcast %16 : vector<6x1xf32> to vector<6x128xf32>
    %19 = vector.broadcast %17 : vector<1x128xf32> to vector<6x128xf32>
    %20 = arith.mulf %18, %19 : vector<6x128xf32>
    %21 = arith.addf %15, %20 : vector<6x128xf32>
    %22 = vector.extract_strided_slice %1 {offsets = [0, 3], sizes = [6, 1], strides = [1, 1]} : vector<6x4xf32> to vector<6x1xf32>
    %c3 = arith.constant 3 : index
    %c0_7 = arith.constant 0 : index
    %23 = vector.load %arg2[%c3, %c0_7] : memref<5x128xf32, #tpu.memory_space<vmem>>, vector<1x128xf32>
    %24 = vector.broadcast %22 : vector<6x1xf32> to vector<6x128xf32>
    %25 = vector.broadcast %23 : vector<1x128xf32> to vector<6x128xf32>
    %26 = arith.mulf %24, %25 : vector<6x128xf32>
    %27 = arith.addf %21, %26 : vector<6x128xf32>
    %28 = math.sin %27 : vector<6x128xf32>
    %c0_8 = arith.constant 0 : index
    %c0_9 = arith.constant 0 : index
    %c0_10 = arith.constant 0 : index
    %29 = vector.load %arg4[%c0_8, %c0_9, %c0_10] : memref<1x6x128xf32, #tpu.memory_space<vmem>>, vector<1x6x128xf32>
    %30 = vector.shape_cast %29 : vector<1x6x128xf32> to vector<6x128xf32>
    %31 = vector.shape_cast %28 : vector<6x128xf32> to vector<1x6x128xf32>
    tpu.vector_store %arg4[%c0_8, %c0_9, %c0_10], %31 {strides = array<i32>} : memref<1x6x128xf32, #tpu.memory_space<vmem>>, vector<1x6x128xf32>,
    return
  }
  func.func @transform_0(%arg0: i32, %arg1: i32) -> (i32, i32) {
    %c0_i32 = arith.constant 0 : i32
    %c0_i32_0 = arith.constant 0 : i32
    %c0_i32_1 = arith.constant 0 : i32
    return %c0_i32, %c0_i32_0 : i32, i32
  }
  func.func @transform_1(%arg0: i32, %arg1: i32) -> (i32, i32, i32) {
    %c0_i32 = arith.constant 0 : i32
    %c0_i32_0 = arith.constant 0 : i32
    return %arg0, %arg1, %c0_i32 : i32, i32, i32
  }
  func.func @transform_2(%arg0: i32, %arg1: i32) -> (i32, i32, i32) {
    %c0_i32 = arith.constant 0 : i32
    %c0_i32_0 = arith.constant 0 : i32
    return %arg0, %arg1, %c0_i32 : i32, i32, i32
  }
}

</mosaic_0001>

<llo_original>
// kernel: tpu_custom_call.1
$region0: #{tpu_custom_call.1}
  #allocation0 [shape = 'u32[]', space=smem, size = 0x4, offset = 0x4, fixed_abs, tag = 'smem constant byte address 0x4 - core index']
  #allocation1 [shape = 'u32[144,128]{1,0:T(1,128)}', space=vmem, size = 0x12000, scoped, tag = 'internal scratch']
  %s0 = inlined_call_operand.vmem [shape: f32[5,128], index: 0, kind: input, shape index: {}]
  %s1 = inlined_call_operand.vmem [shape: f32[2,6,4], index: 1, kind: input, shape index: {}]
  %s2 = inlined_call_operand.vmem [shape: f32[2,6,128], index: 2, kind: output, shape index: {}]
  %s3 = sld [smem:[#allocation0]]
  $region41: #{tpu_custom_call.1} parent=0
    _
  %s5 = ssub.s32 1, %s3
  %s6 = scalar_select 0, %s5, %s3
  loop: start=0, step=1, limit=4
  $region2: #{tpu_custom_call.1} parent=0 // loop_pre_header
    _
  $region3: #{tpu_custom_call.1} parent=0 // loop_header
    %s8 = sphi 0, %s12
    %p9 = scmp.ge.s32.totalorder %s8, 4
    %s15 = sphi 0, %s27
    %s16 = sphi 0, %s23
    %s17 = sphi 0, %s15
    %s18 = sphi 0, %s16
    %s19 = sphi 0, %s17
    %s20 = sphi 0, %s18
    %s28 = sphi 0, %s28
    %s30 = sphi 0, %s28
    %s31 = sphi 0, %s30
    %s45 = sphi 0, %s31
    %s53 = sphi 0, %s55
    %s56 = sphi 0, %s53
    %s57 = sphi 0, %s56
    %s73 = sphi 0, %s57
    %s81 = sphi 0, %s83
    %s84 = sphi 0, %s81
    %s85 = sphi 0, %s84
    %s101 = sphi 0, %s85
  $region4: #{tpu_custom_call.1} parent=0 // loop_header_branch
    %11 = sbr.rel (%p9) target = $region8
  $region5: #{tpu_custom_call.1} parent=0 // loop_body
    %s13 = ssub.s32 %s8, 1
    %s14 = ssub.s32 %s8, 2
    %s21 = sadd.s32 1, %s16
    %p22 = scmp.ge.s32.totalorder %s21, 1
    %s23 = scalar_select %p22, 0, %s21
    %s24 = sadd.s32 1, %s15
    %s25 = scalar_select %p22, %s24, %s15
    %p26 = scmp.ge.s32.totalorder %s25, 2
    %s27 = scalar_select %p26, 0, %s25
    %s29 = sadd.s32 %s28, 1
    %p32 = scmp.eq.s32.totalorder %s8, 1
    %p33 = scmp.ne.s32.totalorder %s28, %s30
    %p34 = scmp.eq.s32.totalorder %s8, 0
    %p35 = por %p33, %p34
    %p36 = scmp.ne.s32.totalorder %s28, %s30
    %p37 = scmp.eq.s32.totalorder %s13, 1
    %p38 = por %p36, %p37
    %p39 = scmp.ne.s32.totalorder %s30, %s31
    %p40 = scmp.eq.s32.totalorder %s13, 0
    %p41 = por %p39, %p40
    %p42 = scmp.ne.s32.totalorder %s30, %s31
    %p43 = scmp.eq.s32.totalorder %s14, 1
    %p44 = por %p42, %p43
    %p46 = scmp.ne.s32.totalorder %s31, %s45
    %p47 = scmp.eq.s32.totalorder %s14, 0
    %p48 = por %p46, %p47
    %s49 = ssub.s32 %s15, %s27
    %s50 = ssub.s32 %s16, %s23
    %s51 = sor.u32 %s49, %s50
    %p52 = scmp.eq.s32.totalorder %s51, 0
    %s54 = sadd.s32 %s53, 1
    %s55 = scalar_select %p52, %s53, %s54
    %p58 = pneg %p52
    %p59 = scmp.eq.s32.totalorder %s8, 1
    %p60 = por %p58, %p59
    %p61 = scmp.ne.s32.totalorder %s53, %s56
    %p62 = scmp.eq.s32.totalorder %s8, 0
    %p63 = por %p61, %p62
    %p64 = scmp.ne.s32.totalorder %s53, %s56
    %p65 = scmp.eq.s32.totalorder %s13, 1
    %p66 = por %p64, %p65
    %p67 = scmp.ne.s32.totalorder %s56, %s57
    %p68 = scmp.eq.s32.totalorder %s13, 0
    %p69 = por %p67, %p68
    %p70 = scmp.ne.s32.totalorder %s56, %s57
    %p71 = scmp.eq.s32.totalorder %s14, 1
    %p72 = por %p70, %p71
    %p74 = scmp.ne.s32.totalorder %s57, %s73
    %p75 = scmp.eq.s32.totalorder %s14, 0
    %p76 = por %p74, %p75
    %s77 = ssub.s32 %s15, %s27
    %s78 = ssub.s32 %s16, %s23
    %s79 = sor.u32 %s77, %s78
    %p80 = scmp.eq.s32.totalorder %s79, 0
    %s82 = sadd.s32 %s81, 1
    %s83 = scalar_select %p80, %s81, %s82
    %p86 = pneg %p80
    %p87 = scmp.eq.s32.totalorder %s8, 1
    %p88 = por %p86, %p87
    %p89 = scmp.ne.s32.totalorder %s81, %s84
    %p90 = scmp.eq.s32.totalorder %s8, 0
    %p91 = por %p89, %p90
    %p92 = scmp.ne.s32.totalorder %s81, %s84
    %p93 = scmp.eq.s32.totalorder %s13, 1
    %p94 = por %p92, %p93
    %p95 = scmp.ne.s32.totalorder %s84, %s85
    %p96 = scmp.eq.s32.totalorder %s13, 0
    %p97 = por %p95, %p96
    %p98 = scmp.ne.s32.totalorder %s84, %s85
    %p99 = scmp.eq.s32.totalorder %s14, 1
    %p100 = por %p98, %p99
    %p102 = scmp.ne.s32.totalorder %s85, %s101
    %p103 = scmp.eq.s32.totalorder %s14, 0
    %p104 = por %p102, %p103
    %p105 = scmp.le.s32.totalorder 1, %s8
    %p106 = scmp.lt.s32.totalorder %s8, 3
    %p107 = pnand %p105, %p106
    %p108 = pneg %p107
    // Predicated region
    $region9: #{tpu_custom_call.1} parent=5 // pred_check
      _
    $region10: #{tpu_custom_call.1} parent=5 // pred_check_branch
      %110 = sbr.rel (%p107) target = $region12
    $region11: #{tpu_custom_call.1} parent=5 // pred_region
      %s111 = ssub.s32 %s8, 1
      // Predicated region
      $region13: #{tpu_custom_call.1} parent=11 // pred_check
        %p112 = pneg %p41
      $region14: #{tpu_custom_call.1} parent=11 // pred_check_branch
        %114 = sbr.rel (%p112) target = $region16
      $region15: #{tpu_custom_call.1} parent=11 // pred_region
        _
      $region16: #{tpu_custom_call.1} parent=11 // pred_fallthru
        _
    $region12: #{tpu_custom_call.1} parent=5 // pred_fallthru
      _
    %p115 = scmp.lt.s32.totalorder %s8, 2
    // Predicated region
    $region17: #{tpu_custom_call.1} parent=5 // pred_check
      %p116 = pneg %p115
    $region18: #{tpu_custom_call.1} parent=5 // pred_check_branch
      %118 = sbr.rel (%p116) target = $region20
    $region19: #{tpu_custom_call.1} parent=5 // pred_region
      // Predicated region
      $region21: #{tpu_custom_call.1} parent=19 // pred_check
        %p119 = pneg %p63
      $region22: #{tpu_custom_call.1} parent=19 // pred_check_branch
        %121 = sbr.rel (%p119) target = $region24
      $region23: #{tpu_custom_call.1} parent=19 // pred_region
        %p122 = scmp.lt.s32.totalorder %s15, 1
        %s123 = scalar_select %p122, %s15, 1
        %p124 = scmp.lt.s32.totalorder %s16, 0
        %s125 = scalar_select %p124, %s16, 0
        %s126 = sadd.s32 %s125, %s123
        %s127 = smul.addr %s126, 8
        %s128 = scalar_lea.vmem %s1, %s127
      $region24: #{tpu_custom_call.1} parent=19 // pred_fallthru
        _
    $region20: #{tpu_custom_call.1} parent=5 // pred_fallthru
      _
    %p129 = scmp.le.s32.totalorder 1, %s8
    %p130 = scmp.lt.s32.totalorder %s8, 3
    %p131 = pnand %p129, %p130
    %p132 = pneg %p131
    // Predicated region
    $region25: #{tpu_custom_call.1} parent=5 // pred_check
      _
    $region26: #{tpu_custom_call.1} parent=5 // pred_check_branch
      %134 = sbr.rel (%p131) target = $region28
    $region27: #{tpu_custom_call.1} parent=5 // pred_region
      %s135 = ssub.s32 %s8, 1
      %p136 = pneg %p41
      %p137 = pneg %p38
      %p138 = scmp.lt.s32.totalorder %s17, 1
      %s139 = scalar_select %p138, %s17, 1
      %p140 = scmp.lt.s32.totalorder %s18, 0
      %s141 = scalar_select %p140, %s18, 0
      %s142 = sadd.s32 %s141, %s139
      %s143 = smul.addr %s142, 8
      %s144 = scalar_lea.vmem %s1, %s143
      %p145 = pneg %p69
      %p146 = pneg %p66
      %p147 = pneg %p97
      %p148 = pneg %p94
      %p149 = scmp.lt.s32.totalorder %s17, 1
      %s150 = scalar_select %p149, %s17, 1
      %p151 = scmp.lt.s32.totalorder %s18, 0
      %s152 = scalar_select %p151, %s18, 0
      %s153 = sadd.s32 %s152, %s150
      %s154 = smul.addr %s153, 8
      %s155 = scalar_lea.vmem %s2, %s154
      %p156 = scmp.lt.s32.totalorder %s17, 1
      %s157 = scalar_select %p156, %s17, 1
      %p158 = scmp.lt.s32.totalorder %s18, 0
      %s159 = scalar_select %p158, %s18, 0
      %s160 = sadd.s32 %s159, %s157
      %s161 = smul.addr %s160, 8
      %s162 = scalar_lea.vmem %s1, %s161
      %p163 = scmp.lt.s32.totalorder %s17, 1
      %s164 = scalar_select %p163, %s17, 1
      %p165 = scmp.lt.s32.totalorder %s18, 0
      %s166 = scalar_select %p165, %s18, 0
      %s167 = sadd.s32 %s166, %s164
      %s168 = smul.addr %s167, 8
      %s169 = scalar_lea.vmem %s2, %s168
      %v170 = vld [vmem:[%s162] sm:$0x3f]
      %v171 = vld [vmem:[%s0 + $0x4] sm:$0x1]
      %v172 = vld [vmem:[%s0] sm:$0x1]
      %174 = vset.pattern.permute.xlu0 0
      %175 = vperm.xlu0 %174, %v170
      %v176 = vpop.permute.xlu0 %175
      %v178 = vlaneseq
      %v179 = vshrl.u32 %v178, 7
      %v180 = vsub.s32 0, %v179
      %v181 = vrot.slane %v172, %v180
      %v182 = vmul.f32 %v176, %v181
      %v183 = vlaneseq
      %v184 = vshrl.u32 %v183, 7
      %v185 = vsub.s32 0, %v184
      %v186 = vrot.slane %v171, %v185
      %v187 = vadd.f32 %v186, %v182
      %v188 = vld [vmem:[%s0 + $0x1] sm:$0x1]
      %189 = vset.pattern.permute.xlu0 1
      %190 = vperm.xlu0 %189, %v170
      %v191 = vpop.permute.xlu0 %190
      %v193 = vlaneseq
      %v194 = vshrl.u32 %v193, 7
      %v195 = vsub.s32 0, %v194
      %v196 = vrot.slane %v188, %v195
      %v197 = vmul.f32 %v191, %v196
      %v198 = vadd.f32 %v187, %v197
      %v199 = vld [vmem:[%s0 + $0x2] sm:$0x1]
      %200 = vset.pattern.permute.xlu0 2
      %201 = vperm.xlu0 %200, %v170
      %v202 = vpop.permute.xlu0 %201
      %v204 = vlaneseq
      %v205 = vshrl.u32 %v204, 7
      %v206 = vsub.s32 0, %v205
      %v207 = vrot.slane %v199, %v206
      %v208 = vmul.f32 %v202, %v207
      %v209 = vadd.f32 %v198, %v208
      %v210 = vld [vmem:[%s0 + $0x3] sm:$0x1]
      %211 = vset.pattern.permute.xlu0 3
      %212 = vperm.xlu0 %211, %v170
      %v213 = vpop.permute.xlu0 %212
      %v215 = vlaneseq
      %v216 = vshrl.u32 %v215, 7
      %v217 = vsub.s32 0, %v216
      %v218 = vrot.slane %v210, %v217
      %v219 = vmul.f32 %v213, %v218
      %v220 = vadd.f32 %v209, %v219
      %v221 = vand.u32 2147483647, %v220
      %vm222 = vcmp.le.f32.partialorder %v221, 0.7853982
      %vm223 = vcmp.lt.s32.totalorder %v220, 0
      %v224 = vand.u32 %v220, 2139095040
      %v225 = vshrl.u32 %v224, 23
      %v226 = vsub.s32 %v225, 127
      %v227 = vand.u32 2147483647, %v220
      %v228 = vand.u32 %v227, 8388607
      %v229 = vor.u32 %v228, 8388608
      %v230 = vsub.s32 0, %v229
      %v231 = vadd.s32 %v226, 1
      %vm232 = vcmp.gt.s32.totalorder %v231, 0
      %v233 = vsel %vm232, %v231, 0
      %v234 = vshrl.u32 %v233, 5
      %v235 = vand.u32 %v233, 31
      %v236 = vsub.s32 32, %v235
      %v237 = vshrl.u32 683565275, %v236
      %v238 = vshll.u32 683565275, %v235
      %v239 = vshrl.u32 2475754826, %v236
      %v240 = vor.u32 %v238, %v239
      %v241 = vshll.u32 2475754826, %v235
      %v242 = vshrl.u32 2131351028, %v236
      %v243 = vor.u32 %v241, %v242
      %v244 = vshll.u32 2131351028, %v235
      %v245 = vshrl.u32 2102212464, %v236
      %v246 = vor.u32 %v244, %v245
      %v247 = vshll.u32 2102212464, %v235
      %v248 = vshrl.u32 920167782, %v236
      %v249 = vor.u32 %v247, %v248
      %v250 = vshll.u32 920167782, %v235
      %v251 = vshrl.u32 1326507024, %v236
      %v252 = vor.u32 %v250, %v251
      %vm253 = vcmp.lt.s32.totalorder %v234, 1
      %vm254 = vcmp.lt.s32.totalorder %v234, 2
      %vm255 = vcmp.lt.s32.totalorder %v234, 3
      %vm256 = vcmp.lt.s32.totalorder %v234, 4
      %v257 = vsel %vm253, %v237, %v240
      %v258 = vsel %vm256, %v246, 2102212464
      %v259 = vsel %vm255, %v243, %v258
      %v260 = vsel %vm254, %v257, %v259
      %v261 = vsel %vm253, %v240, %v243
      %v262 = vsel %vm256, %v249, 920167782
      %v263 = vsel %vm255, %v246, %v262
      %v264 = vsel %vm254, %v261, %v263
      %v265 = vsel %vm253, %v243, %v246
      %v266 = vsel %vm256, %v252, 1326507024
      %v267 = vsel %vm255, %v249, %v266
      %v268 = vsel %vm254, %v265, %v267
      %v269 = vshll.u32 %v229, 8
      %v270 = vmul.u32.u64.compose %v269, %v268
      %v271 = vextract.low.u32 %v270
      %v272 = vextract.high.u32 %v270
      %v273 = vmul.u32.u64.compose %v269, %v264
      %v274 = vextract.low.u32 %v273
      %v275 = vextract.high.u32 %v273
      %v276 = vmul.u32 %v269, %v260
      %v277 = vadd.s32 %v272, %v274
      %vm278 = vc.u32 %v272, %v274
      %v279 = vadd.s32 %v275, 1
      %v280 = vsel %vm278, %v279, %v275
      %v281 = vadd.s32 %v276, %v280
      %v282 = vadd.s32 %v281, 536870912
      %v283 = vshrl.u32 %v282, 30
      %v284 = vshll.u32 %v283, 30
      %v285 = vsub.s32 %v281, %v284
      %vm286 = vcmp.lt.s32.totalorder %v285, 0
      %v287 = vsub.s32 0, %v285
      %v288 = vsel %vm286, %v287, %v285
      %v289 = vclz %v288
      %v290 = vsub.s32 %v289, 2
      %vm291 = vcmp.gt.s32.totalorder 0, %v290
      %v292 = vsel %vm291, 0, %v290
      %v293 = vsub.s32 32, %v292
      %v294 = vshll.u32 %v285, %v292
      %v295 = vshrl.u32 %v277, %v293
      %v296 = vor.u32 %v294, %v295
      %v297 = vsub.s32 4294967266, %v292
      %v298 = vadd.s32 %v297, 127
      %v299 = vshll.u32 %v298, 23
      %v300 = vor.u32 4788187, %v299
      %v301 = vand.u32 2147483647, %v300
      %v303 = vcvt.s32.f32 %v296
      %v304 = vmul.f32 %v303, %v301
      %v305 = vxor.u32 %v304, 2147483648
      %v306 = vsel %vm223, %v305, %v304
      %v307 = vsub.s32 4, %v283
      %v308 = vsel %vm223, %v307, %v283
      %v309 = vsel %vm222, %v220, %v306
      %v310 = vsel %vm222, 0, %v308
      %v311 = vcosq.f32.pop %v309
      %v312 = vsinq.f32.pop %v309
      %vm313 = vweird.f32 %v220
      %v314 = vadd.s32 %v310, 3
      %v315 = vand.u32 %v314, 3
      %vm316 = vcmp.lt.s32.totalorder %v315, 2
      %vm317 = vcmp.eq.s32.totalorder %v315, 0
      %v318 = vxor.u32 %v312, 2147483648
      %v319 = vsel %vm317, %v311, %v318
      %vm320 = vcmp.eq.s32.totalorder %v315, 2
      %v321 = vxor.u32 %v311, 2147483648
      %v322 = vsel %vm320, %v321, %v312
      %v323 = vsel %vm316, %v319, %v322
      %v324 = vsel %vm313, nan, %v323
      %325 = vst [vmem:[%s169] sm:$0x3f] %v324
      %p326 = scmp.lt.s32.totalorder %s17, 1
      %s327 = scalar_select %p326, %s17, 1
      %p328 = scmp.lt.s32.totalorder %s18, 0
      %s329 = scalar_select %p328, %s18, 0
      %s330 = sadd.s32 %s329, %s327
      %s331 = smul.addr %s330, 8
      %s332 = scalar_lea.vmem %s2, %s331
      // Predicated region
      $region29: #{tpu_custom_call.1} parent=27 // pred_check
        %p333 = pneg %p94
      $region30: #{tpu_custom_call.1} parent=27 // pred_check_branch
        %335 = sbr.rel (%p333) target = $region32
      $region31: #{tpu_custom_call.1} parent=27 // pred_region
        _
      $region32: #{tpu_custom_call.1} parent=27 // pred_fallthru
        _
    $region28: #{tpu_custom_call.1} parent=5 // pred_fallthru
      _
    %p336 = scmp.le.s32.totalorder 2, %s8
    // Predicated region
    $region33: #{tpu_custom_call.1} parent=5 // pred_check
      %p337 = pneg %p336
    $region34: #{tpu_custom_call.1} parent=5 // pred_check_branch
      %339 = sbr.rel (%p337) target = $region36
    $region35: #{tpu_custom_call.1} parent=5 // pred_region
      %s340 = ssub.s32 %s8, 2
      // Predicated region
      $region37: #{tpu_custom_call.1} parent=35 // pred_check
        %p341 = pneg %p100
      $region38: #{tpu_custom_call.1} parent=35 // pred_check_branch
        %343 = sbr.rel (%p341) target = $region40
      $region39: #{tpu_custom_call.1} parent=35 // pred_region
        %p344 = scmp.lt.s32.totalorder %s19, 1
        %s345 = scalar_select %p344, %s19, 1
        %p346 = scmp.lt.s32.totalorder %s20, 0
        %s347 = scalar_select %p346, %s20, 0
        %s348 = sadd.s32 %s347, %s345
        %s349 = smul.addr %s348, 8
        %s350 = scalar_lea.vmem %s2, %s349
      $region40: #{tpu_custom_call.1} parent=35 // pred_fallthru
        _
    $region36: #{tpu_custom_call.1} parent=5 // pred_fallthru
      _
  $region6: #{tpu_custom_call.1} parent=0 // loop_footer
    %s12 = sadd.s32 1, %s8
  $region7: #{tpu_custom_call.1} parent=0 // loop_footer_branch
    %7 = sbr.rel target = $region3
  $region8: #{tpu_custom_call.1} parent=0 // loop_exit
    _

</llo_original>
